<compile_context>
chip_gen: v7x
topology: tpu7x:2x2x1
jax: 0.10.0
libtpu: 0.0.40
codegen_flags: <defaults>
</compile_context>

<pallas_src>
import functools

import jax
import jax.numpy as jnp
from jax import lax
from jax.experimental import pallas as pl
from jax.experimental.pallas import tpu as pltpu

# ---- hyper-parameters that `args` would carry in the reference module ----
N_CLASSES = 2
GIVEN_ALPHA = 0.9
GIVEN_BETA = 0.1
CLIPPING = 0.99
N_ITERS = 5
N_SAMPLES = 1  # unused (see TODO above)


def deep_bp_kernel(xT_ref, w1T_ref, b1_ref, w2T_ref, b2_ref, prior_ref, ann_hbm,
                   loss_ref, zinf_ref, zlearn_ref,
                   ann_vmem, ann_sem, *, n_iters, clipping):
    """Classifier MLP + softmax/clamp + loopy BP + loss, all in [C, N] layout."""
    # ---- single-buffered manual DMA of the bf16 adjacency: HBM -> VMEM ----
    ann_cp = pltpu.make_async_copy(ann_hbm, ann_vmem, ann_sem)
    ann_cp.start()

    # ------------------ Classifier (2-layer MLP), transposed ------------------
    # hT = relu(W1^T @ x^T + b1) : [H, N];  logitsT = W2^T @ hT + b2 : [C, N]
    h = jnp.dot(w1T_ref[...], xT_ref[...],
                preferred_element_type=jnp.float32) + b1_ref[...]
    h = jnp.maximum(h, 0.0)
    logits = jnp.dot(w2T_ref[...], h,
                     preferred_element_type=jnp.float32) + b2_ref[...]   # [2, N]

    # softmax over the class (sublane) axis: 2 rows -> pure VPU max/add
    l0 = logits[0:1, :]
    l1 = logits[1:2, :]
    m = jnp.maximum(l0, l1)
    e0 = jnp.exp(l0 - m)
    e1 = jnp.exp(l1 - m)
    inv_s = 1.0 / (e0 + e1)   # exact: z_learning feeds the loss through log()

    # torch.clamp(z, min=1-clipping, max=clipping) + 1e-9
    z0 = jnp.clip(e0 * inv_s, 1.0 - clipping, clipping) + 1e-9
    z1 = jnp.clip(e1 * inv_s, 1.0 - clipping, clipping) + 1e-9
    logz0 = jnp.log(z0)
    logz1 = jnp.log(z1)

    # hoisted broadcasts of the 2x2 pairwise potential (JAX does not CSE them)
    p00 = jnp.full(z0.shape, prior_ref[0, 0], jnp.float32)
    p01 = jnp.full(z0.shape, prior_ref[0, 1], jnp.float32)
    p10 = jnp.full(z0.shape, prior_ref[1, 0], jnp.float32)
    p11 = jnp.full(z0.shape, prior_ref[1, 1], jnp.float32)

    ann_cp.wait()   # ann now resident (single VMEM buffer)

    # ------------------ run_bp (loopy belief propagation) ------------------
    def bp_body(_, carry):
        b0, b1 = carry                                   # each [1, N]
        # neighbor marginal through the pairwise potential: nb = prior^T @ b
        nb0 = b0 * p00 + b1 * p10
        nb1 = b0 * p01 + b1 * p11
        lognb = jnp.log(jnp.concatenate([nb0, nb1], axis=0))        # [2, N]
        # aggregate log-messages: [2, N] @ [N, N]  (ann symmetric)
        msg = jnp.dot(lognb.astype(jnp.bfloat16), ann_vmem[...],
                      preferred_element_type=jnp.float32)            # [2, N]
        lb0 = logz0 + msg[0:1, :]
        lb1 = logz1 + msg[1:2, :]
        mm = jnp.maximum(lb0, lb1)
        eb0 = jnp.exp(lb0 - mm)
        eb1 = jnp.exp(lb1 - mm)
        inv = pl.reciprocal(eb0 + eb1, approx=True)      # EUP slot, ~free
        return (eb0 * inv, eb1 * inv)

    b0f, b1f = lax.fori_loop(0, n_iters, bp_body, (z0, z1), unroll=True)

    # torch.no_grad() -> inference branch carries no gradient (forward-only here)
    b0f = lax.stop_gradient(b0f)
    b1f = lax.stop_gradient(b1f)

    zinf = jnp.concatenate([b0f, b1f], axis=0)           # [2, N]
    zlearn = jnp.concatenate([z0, z1], axis=0)           # [2, N]
    logzl = jnp.concatenate([logz0, logz1], axis=0)      # [2, N]

    # ------------------ loss = -(z_inference * log z_learning).sum() ------
    loss_ref[...] = -jnp.sum(zinf * logzl, axis=(0, 1), keepdims=True)
    zinf_ref[...] = zinf
    zlearn_ref[...] = zlearn


@functools.partial(jax.jit, static_argnames=("n_iters", "clipping"))
def model_forward(x, ann, w1, b1, w2, b2, prior,
                  *, n_iters=N_ITERS, clipping=CLIPPING):
    """Wrapper: transposed (lane-dense) layout, single grid cell, bf16 ann."""
    N, D = x.shape
    H = w1.shape[1]
    C = w2.shape[1]

    # lane-dense layout: nodes on the last (lane) axis everywhere
    xT = x.T.astype(jnp.float32)                 # [D, N]
    w1T = w1.T.astype(jnp.float32)               # [H, D]
    w2T = w2.T.astype(jnp.float32)               # [C, H]
    b1c = b1.reshape(-1, 1).astype(jnp.float32)  # [H, 1]
    b2c = b2.reshape(-1, 1).astype(jnp.float32)  # [C, 1]
    ann_bf = ann.astype(jnp.bfloat16)            # 0/1 adjacency: exact in bf16

    kernel = functools.partial(deep_bp_kernel, n_iters=n_iters, clipping=clipping)

    def full2d(shape):
        return pl.BlockSpec(shape, lambda i: (0, 0))

    # explicit VMEM budget: single-buffered bf16 ann + the (double-buffered) small blocks
    ann_bytes = N * N * 2
    small_bytes = 4 * (D * N + H * D + H + C * H + C + 3 * C * N + 1)
    vmem_limit = int(min(64 << 20, max(16 << 20, ann_bytes + 2 * small_bytes + (2 << 20))))

    loss, zinf_t, zlearn_t = pl.pallas_call(
        kernel,
        grid=(1,),
        in_specs=[
            full2d((D, N)),                                       # x^T
            full2d((H, D)),                                       # w1^T
            full2d((H, 1)),                                       # b1 (column)
            full2d((C, H)),                                       # w2^T
            full2d((C, 1)),                                       # b2 (column)
            pl.BlockSpec(memory_space=pltpu.MemorySpace.SMEM),    # prior (2x2 scalars)
            pl.BlockSpec(memory_space=pl.ANY),                    # ann (HBM, manual DMA)
        ],
        out_specs=(
            full2d((1, 1)),                                       # loss
            full2d((C, N)),                                       # z_inference (lane-dense)
            full2d((C, N)),                                       # z_learning  (lane-dense)
        ),
        out_shape=(
            jax.ShapeDtypeStruct((1, 1), jnp.float32),
            jax.ShapeDtypeStruct((C, N), jnp.float32),
            jax.ShapeDtypeStruct((C, N), jnp.float32),
        ),
        scratch_shapes=[
            pltpu.VMEM((N, N), jnp.bfloat16),                     # single-buffered ann
            pltpu.SemaphoreType.DMA,                              # its DMA semaphore
        ],
        compiler_params=pltpu.CompilerParams(
            dimension_semantics=("arbitrary",),
            vmem_limit_bytes=vmem_limit,
        ),
    )(xT, w1T, b1c, w2T, b2c, prior, ann_bf)

    # restore the reference [N, C] orientation outside the kernel
    return loss[0, 0], zinf_t.T, zlearn_t.T


if __name__ == "__main__":
    key = jax.random.PRNGKey(0)
    N, D, H, C = 128, 32, 64, N_CLASSES
    k1, k2, k3, k4 = jax.random.split(key, 4)

    # deterministic example inputs
    x = jax.random.normal(k1, (N, D), jnp.float32)
    upper = jnp.triu((jax.random.uniform(k2, (N, N)) < 0.05).astype(jnp.float32), k=1)
    ann = upper + upper.T                       # symmetric 0/1 adjacency, zero diagonal

    # deterministic parameter init (shapes implied by Classifier: D -> H -> 2)
    w1 = jax.random.normal(k3, (D, H), jnp.float32) * (1.0 / jnp.sqrt(D))
    b1 = jnp.zeros((H,), jnp.float32)
    w2 = jax.random.normal(k4, (H, C), jnp.float32) * (1.0 / jnp.sqrt(H))
    b2 = jnp.zeros((C,), jnp.float32)
    prior = jnp.array([[GIVEN_ALPHA, GIVEN_BETA],
                       [GIVEN_BETA, GIVEN_ALPHA]], jnp.float32)

    loss, z_inf, z_learn = model_forward(x, ann, w1, b1, w2, b2, prior)
    jax.block_until_ready((loss, z_inf, z_learn))

    assert loss.shape == () and z_inf.shape == (N, C) and z_learn.shape == (N, C)
    assert bool(jnp.isfinite(loss))
    assert bool(jnp.all(jnp.isfinite(z_inf))) and bool(jnp.all(jnp.isfinite(z_learn)))
    print("KERNEL_OK")
</pallas_src>

<mosaic_0001>
module attributes {stable_mosaic.version = 11 : i64} {
  func.func @deep_bp_kernel(%arg0: i32, %arg1: memref<32x128xf32, #tpu.memory_space<vmem>>, %arg2: memref<64x32xf32, #tpu.memory_space<vmem>>, %arg3: memref<64x1xf32, #tpu.memory_space<vmem>>, %arg4: memref<2x64xf32, #tpu.memory_space<vmem>>, %arg5: memref<2x1xf32, #tpu.memory_space<vmem>>, %arg6: memref<2x2xf32, #tpu.memory_space<smem>>, %arg7: memref<128x128xbf16, #tpu.memory_space<any>>, %arg8: memref<1x1xf32, #tpu.memory_space<vmem>>, %arg9: memref<2x128xf32, #tpu.memory_space<vmem>>, %arg10: memref<2x128xf32, #tpu.memory_space<vmem>>, %arg11: memref<128x128xbf16, #tpu.memory_space<vmem>>, %arg12: memref<!tpu.dma_semaphore, #tpu.memory_space<semaphore_mem>>) attributes {dimension_semantics = [#tpu.dimension_semantics<arbitrary>], iteration_bounds = array<i64: 1>, scalar_prefetch = 0 : i64, scratch_operands = 2 : i64, tpu.core_type = #tpu.core_type<tc>, window_params = [{pipeline_mode = #tpu.pipeline_mode<synchronous>, transform_indices = @transform_0, window_bounds = array<i64: 32, 128>}, {pipeline_mode = #tpu.pipeline_mode<synchronous>, transform_indices = @transform_1, window_bounds = array<i64: 64, 32>}, {pipeline_mode = #tpu.pipeline_mode<synchronous>, transform_indices = @transform_2, window_bounds = array<i64: 64, 1>}, {pipeline_mode = #tpu.pipeline_mode<synchronous>, transform_indices = @transform_3, window_bounds = array<i64: 2, 64>}, {pipeline_mode = #tpu.pipeline_mode<synchronous>, transform_indices = @transform_4, window_bounds = array<i64: 2, 1>}, {transform_indices = @transform_5, window_bounds = array<i64: 2, 2>}, {}, {pipeline_mode = #tpu.pipeline_mode<synchronous>, transform_indices = @transform_7, window_bounds = array<i64: 1, 1>}, {pipeline_mode = #tpu.pipeline_mode<synchronous>, transform_indices = @transform_8, window_bounds = array<i64: 2, 128>}, {pipeline_mode = #tpu.pipeline_mode<synchronous>, transform_indices = @transform_9, window_bounds = array<i64: 2, 128>}]} {
    tpu.enqueue_dma source(%arg7 : memref<128x128xbf16, #tpu.memory_space<any>>) target(%arg11 : memref<128x128xbf16, #tpu.memory_space<vmem>>) target_semaphore(%arg12 : memref<!tpu.dma_semaphore, #tpu.memory_space<semaphore_mem>>)
    %c0 = arith.constant 0 : index
    %c0_0 = arith.constant 0 : index
    %0 = vector.load %arg2[%c0, %c0_0] : memref<64x32xf32, #tpu.memory_space<vmem>>, vector<64x32xf32>
    %c0_1 = arith.constant 0 : index
    %c0_2 = arith.constant 0 : index
    %1 = vector.load %arg1[%c0_1, %c0_2] : memref<32x128xf32, #tpu.memory_space<vmem>>, vector<32x128xf32>
    %cst = arith.constant dense<0.000000e+00> : vector<64x128xf32>
    %2 = tpu.matmul %0, %1, %cst {dimension_numbers = #tpu.dot_dimension_numbers<[1], [0], [0], [1], [0, 0, 1, 1], [], []>} : vector<64x32xf32>, vector<32x128xf32>, vector<64x128xf32> -> vector<64x128xf32>
    %c0_3 = arith.constant 0 : index
    %c0_4 = arith.constant 0 : index
    %3 = vector.load %arg3[%c0_3, %c0_4] : memref<64x1xf32, #tpu.memory_space<vmem>>, vector<64x1xf32>
    %4 = vector.broadcast %3 : vector<64x1xf32> to vector<64x128xf32>
    %5 = arith.addf %2, %4 : vector<64x128xf32>
    %cst_5 = arith.constant 0.000000e+00 : f32
    %6 = vector.broadcast %cst_5 : f32 to vector<64x128xf32>
    %7 = arith.maximumf %5, %6 : vector<64x128xf32>
    %c0_6 = arith.constant 0 : index
    %c0_7 = arith.constant 0 : index
    %8 = vector.load %arg4[%c0_6, %c0_7] : memref<2x64xf32, #tpu.memory_space<vmem>>, vector<2x64xf32>
    %cst_8 = arith.constant dense<0.000000e+00> : vector<2x128xf32>
    %9 = tpu.matmul %8, %7, %cst_8 {dimension_numbers = #tpu.dot_dimension_numbers<[1], [0], [0], [1], [0, 0, 1, 1], [], []>} : vector<2x64xf32>, vector<64x128xf32>, vector<2x128xf32> -> vector<2x128xf32>
    %c0_9 = arith.constant 0 : index
    %c0_10 = arith.constant 0 : index
    %10 = vector.load %arg5[%c0_9, %c0_10] : memref<2x1xf32, #tpu.memory_space<vmem>>, vector<2x1xf32>
    %11 = vector.broadcast %10 : vector<2x1xf32> to vector<2x128xf32>
    %12 = arith.addf %9, %11 : vector<2x128xf32>
    %13 = vector.extract_strided_slice %12 {offsets = [0, 0], sizes = [1, 128], strides = [1, 1]} : vector<2x128xf32> to vector<1x128xf32>
    %14 = vector.extract_strided_slice %12 {offsets = [1, 0], sizes = [1, 128], strides = [1, 1]} : vector<2x128xf32> to vector<1x128xf32>
    %15 = arith.maximumf %13, %14 : vector<1x128xf32>
    %16 = arith.subf %13, %15 : vector<1x128xf32>
    %17 = math.exp %16 : vector<1x128xf32>
    %18 = arith.subf %14, %15 : vector<1x128xf32>
    %19 = math.exp %18 : vector<1x128xf32>
    %20 = arith.addf %17, %19 : vector<1x128xf32>
    %cst_11 = arith.constant 1.000000e+00 : f32
    %21 = vector.broadcast %cst_11 : f32 to vector<1x128xf32>
    %22 = arith.divf %21, %20 : vector<1x128xf32>
    %23 = arith.mulf %17, %22 : vector<1x128xf32>
    %cst_12 = arith.constant 0.00999999977 : f32
    %cst_13 = arith.constant 9.900000e-01 : f32
    %24 = vector.broadcast %cst_12 : f32 to vector<1x128xf32>
    %25 = arith.maximumf %24, %23 : vector<1x128xf32>
    %26 = vector.broadcast %cst_13 : f32 to vector<1x128xf32>
    %27 = arith.minimumf %26, %25 : vector<1x128xf32>
    %cst_14 = arith.constant 9.99999971E-10 : f32
    %28 = vector.broadcast %cst_14 : f32 to vector<1x128xf32>
    %29 = arith.addf %27, %28 : vector<1x128xf32>
    %30 = arith.mulf %19, %22 : vector<1x128xf32>
    %cst_15 = arith.constant 0.00999999977 : f32
    %cst_16 = arith.constant 9.900000e-01 : f32
    %31 = vector.broadcast %cst_15 : f32 to vector<1x128xf32>
    %32 = arith.maximumf %31, %30 : vector<1x128xf32>
    %33 = vector.broadcast %cst_16 : f32 to vector<1x128xf32>
    %34 = arith.minimumf %33, %32 : vector<1x128xf32>
    %cst_17 = arith.constant 9.99999971E-10 : f32
    %35 = vector.broadcast %cst_17 : f32 to vector<1x128xf32>
    %36 = arith.addf %34, %35 : vector<1x128xf32>
    %37 = math.log %29 : vector<1x128xf32>
    %38 = math.log %36 : vector<1x128xf32>
    %c0_18 = arith.constant 0 : index
    %c0_19 = arith.constant 0 : index
    %39 = memref.load %arg6[%c0_18, %c0_19] : memref<2x2xf32, #tpu.memory_space<smem>>
    %40 = vector.broadcast %39 : f32 to vector<1x128xf32>
    %c0_20 = arith.constant 0 : index
    %c1 = arith.constant 1 : index
    %41 = memref.load %arg6[%c0_20, %c1] : memref<2x2xf32, #tpu.memory_space<smem>>
    %42 = vector.broadcast %41 : f32 to vector<1x128xf32>
    %c1_21 = arith.constant 1 : index
    %c0_22 = arith.constant 0 : index
    %43 = memref.load %arg6[%c1_21, %c0_22] : memref<2x2xf32, #tpu.memory_space<smem>>
    %44 = vector.broadcast %43 : f32 to vector<1x128xf32>
    %c1_23 = arith.constant 1 : index
    %c1_24 = arith.constant 1 : index
    %45 = memref.load %arg6[%c1_23, %c1_24] : memref<2x2xf32, #tpu.memory_space<smem>>
    %46 = vector.broadcast %45 : f32 to vector<1x128xf32>
    tpu.wait_dma2 semaphore(%arg12 : memref<!tpu.dma_semaphore, #tpu.memory_space<semaphore_mem>>) src(%arg7 : memref<128x128xbf16, #tpu.memory_space<any>>) dst(%arg11 : memref<128x128xbf16, #tpu.memory_space<vmem>>)
    %c0_i32 = arith.constant 0 : i32
    %47 = arith.mulf %29, %40 : vector<1x128xf32>
    %48 = arith.mulf %36, %44 : vector<1x128xf32>
    %49 = arith.addf %47, %48 : vector<1x128xf32>
    %50 = arith.mulf %29, %42 : vector<1x128xf32>
    %51 = arith.mulf %36, %46 : vector<1x128xf32>
    %52 = arith.addf %50, %51 : vector<1x128xf32>
    %53 = tpu.concatenate %49, %52 in 0 : vector<1x128xf32>, vector<1x128xf32> -> vector<2x128xf32>
    %54 = math.log %53 : vector<2x128xf32>
    %55 = arith.truncf %54 : vector<2x128xf32> to vector<2x128xbf16>
    %c0_25 = arith.constant 0 : index
    %c0_26 = arith.constant 0 : index
    %56 = vector.load %arg11[%c0_25, %c0_26] : memref<128x128xbf16, #tpu.memory_space<vmem>>, vector<128x128xbf16>
    %cst_27 = arith.constant dense<0.000000e+00> : vector<2x128xf32>
    %57 = tpu.matmul %55, %56, %cst_27 {dimension_numbers = #tpu.dot_dimension_numbers<[1], [0], [0], [1], [0, 0, 1, 1], [], []>} : vector<2x128xbf16>, vector<128x128xbf16>, vector<2x128xf32> -> vector<2x128xf32>
    %58 = vector.extract_strided_slice %57 {offsets = [0, 0], sizes = [1, 128], strides = [1, 1]} : vector<2x128xf32> to vector<1x128xf32>
    %59 = arith.addf %37, %58 : vector<1x128xf32>
    %60 = vector.extract_strided_slice %57 {offsets = [1, 0], sizes = [1, 128], strides = [1, 1]} : vector<2x128xf32> to vector<1x128xf32>
    %61 = arith.addf %38, %60 : vector<1x128xf32>
    %62 = arith.maximumf %59, %61 : vector<1x128xf32>
    %63 = arith.subf %59, %62 : vector<1x128xf32>
    %64 = math.exp %63 : vector<1x128xf32>
    %65 = arith.subf %61, %62 : vector<1x128xf32>
    %66 = math.exp %65 : vector<1x128xf32>
    %67 = arith.addf %64, %66 : vector<1x128xf32>
    %68 = tpu.reciprocal %67 {approx = true} : vector<1x128xf32> -> vector<1x128xf32>
    %69 = arith.mulf %64, %68 : vector<1x128xf32>
    %70 = arith.mulf %66, %68 : vector<1x128xf32>
    %c1_i32 = arith.constant 1 : i32
    %71 = arith.mulf %69, %40 : vector<1x128xf32>
    %72 = arith.mulf %70, %44 : vector<1x128xf32>
    %73 = arith.addf %71, %72 : vector<1x128xf32>
    %74 = arith.mulf %69, %42 : vector<1x128xf32>
    %75 = arith.mulf %70, %46 : vector<1x128xf32>
    %76 = arith.addf %74, %75 : vector<1x128xf32>
    %77 = tpu.concatenate %73, %76 in 0 : vector<1x128xf32>, vector<1x128xf32> -> vector<2x128xf32>
    %78 = math.log %77 : vector<2x128xf32>
    %79 = arith.truncf %78 : vector<2x128xf32> to vector<2x128xbf16>
    %c0_28 = arith.constant 0 : index
    %c0_29 = arith.constant 0 : index
    %80 = vector.load %arg11[%c0_28, %c0_29] : memref<128x128xbf16, #tpu.memory_space<vmem>>, vector<128x128xbf16>
    %cst_30 = arith.constant dense<0.000000e+00> : vector<2x128xf32>
    %81 = tpu.matmul %79, %80, %cst_30 {dimension_numbers = #tpu.dot_dimension_numbers<[1], [0], [0], [1], [0, 0, 1, 1], [], []>} : vector<2x128xbf16>, vector<128x128xbf16>, vector<2x128xf32> -> vector<2x128xf32>
    %82 = vector.extract_strided_slice %81 {offsets = [0, 0], sizes = [1, 128], strides = [1, 1]} : vector<2x128xf32> to vector<1x128xf32>
    %83 = arith.addf %37, %82 : vector<1x128xf32>
    %84 = vector.extract_strided_slice %81 {offsets = [1, 0], sizes = [1, 128], strides = [1, 1]} : vector<2x128xf32> to vector<1x128xf32>
    %85 = arith.addf %38, %84 : vector<1x128xf32>
    %86 = arith.maximumf %83, %85 : vector<1x128xf32>
    %87 = arith.subf %83, %86 : vector<1x128xf32>
    %88 = math.exp %87 : vector<1x128xf32>
    %89 = arith.subf %85, %86 : vector<1x128xf32>
    %90 = math.exp %89 : vector<1x128xf32>
    %91 = arith.addf %88, %90 : vector<1x128xf32>
    %92 = tpu.reciprocal %91 {approx = true} : vector<1x128xf32> -> vector<1x128xf32>
    %93 = arith.mulf %88, %92 : vector<1x128xf32>
    %94 = arith.mulf %90, %92 : vector<1x128xf32>
    %c2_i32 = arith.constant 2 : i32
    %95 = arith.mulf %93, %40 : vector<1x128xf32>
    %96 = arith.mulf %94, %44 : vector<1x128xf32>
    %97 = arith.addf %95, %96 : vector<1x128xf32>
    %98 = arith.mulf %93, %42 : vector<1x128xf32>
    %99 = arith.mulf %94, %46 : vector<1x128xf32>
    %100 = arith.addf %98, %99 : vector<1x128xf32>
    %101 = tpu.concatenate %97, %100 in 0 : vector<1x128xf32>, vector<1x128xf32> -> vector<2x128xf32>
    %102 = math.log %101 : vector<2x128xf32>
    %103 = arith.truncf %102 : vector<2x128xf32> to vector<2x128xbf16>
    %c0_31 = arith.constant 0 : index
    %c0_32 = arith.constant 0 : index
    %104 = vector.load %arg11[%c0_31, %c0_32] : memref<128x128xbf16, #tpu.memory_space<vmem>>, vector<128x128xbf16>
    %cst_33 = arith.constant dense<0.000000e+00> : vector<2x128xf32>
    %105 = tpu.matmul %103, %104, %cst_33 {dimension_numbers = #tpu.dot_dimension_numbers<[1], [0], [0], [1], [0, 0, 1, 1], [], []>} : vector<2x128xbf16>, vector<128x128xbf16>, vector<2x128xf32> -> vector<2x128xf32>
    %106 = vector.extract_strided_slice %105 {offsets = [0, 0], sizes = [1, 128], strides = [1, 1]} : vector<2x128xf32> to vector<1x128xf32>
    %107 = arith.addf %37, %106 : vector<1x128xf32>
    %108 = vector.extract_strided_slice %105 {offsets = [1, 0], sizes = [1, 128], strides = [1, 1]} : vector<2x128xf32> to vector<1x128xf32>
    %109 = arith.addf %38, %108 : vector<1x128xf32>
    %110 = arith.maximumf %107, %109 : vector<1x128xf32>
    %111 = arith.subf %107, %110 : vector<1x128xf32>
    %112 = math.exp %111 : vector<1x128xf32>
    %113 = arith.subf %109, %110 : vector<1x128xf32>
    %114 = math.exp %113 : vector<1x128xf32>
    %115 = arith.addf %112, %114 : vector<1x128xf32>
    %116 = tpu.reciprocal %115 {approx = true} : vector<1x128xf32> -> vector<1x128xf32>
    %117 = arith.mulf %112, %116 : vector<1x128xf32>
    %118 = arith.mulf %114, %116 : vector<1x128xf32>
    %c3_i32 = arith.constant 3 : i32
    %119 = arith.mulf %117, %40 : vector<1x128xf32>
    %120 = arith.mulf %118, %44 : vector<1x128xf32>
    %121 = arith.addf %119, %120 : vector<1x128xf32>
    %122 = arith.mulf %117, %42 : vector<1x128xf32>
    %123 = arith.mulf %118, %46 : vector<1x128xf32>
    %124 = arith.addf %122, %123 : vector<1x128xf32>
    %125 = tpu.concatenate %121, %124 in 0 : vector<1x128xf32>, vector<1x128xf32> -> vector<2x128xf32>
    %126 = math.log %125 : vector<2x128xf32>
    %127 = arith.truncf %126 : vector<2x128xf32> to vector<2x128xbf16>
    %c0_34 = arith.constant 0 : index
    %c0_35 = arith.constant 0 : index
    %128 = vector.load %arg11[%c0_34, %c0_35] : memref<128x128xbf16, #tpu.memory_space<vmem>>, vector<128x128xbf16>
    %cst_36 = arith.constant dense<0.000000e+00> : vector<2x128xf32>
    %129 = tpu.matmul %127, %128, %cst_36 {dimension_numbers = #tpu.dot_dimension_numbers<[1], [0], [0], [1], [0, 0, 1, 1], [], []>} : vector<2x128xbf16>, vector<128x128xbf16>, vector<2x128xf32> -> vector<2x128xf32>
    %130 = vector.extract_strided_slice %129 {offsets = [0, 0], sizes = [1, 128], strides = [1, 1]} : vector<2x128xf32> to vector<1x128xf32>
    %131 = arith.addf %37, %130 : vector<1x128xf32>
    %132 = vector.extract_strided_slice %129 {offsets = [1, 0], sizes = [1, 128], strides = [1, 1]} : vector<2x128xf32> to vector<1x128xf32>
    %133 = arith.addf %38, %132 : vector<1x128xf32>
    %134 = arith.maximumf %131, %133 : vector<1x128xf32>
    %135 = arith.subf %131, %134 : vector<1x128xf32>
    %136 = math.exp %135 : vector<1x128xf32>
    %137 = arith.subf %133, %134 : vector<1x128xf32>
    %138 = math.exp %137 : vector<1x128xf32>
    %139 = arith.addf %136, %138 : vector<1x128xf32>
    %140 = tpu.reciprocal %139 {approx = true} : vector<1x128xf32> -> vector<1x128xf32>
    %141 = arith.mulf %136, %140 : vector<1x128xf32>
    %142 = arith.mulf %138, %140 : vector<1x128xf32>
    %c4_i32 = arith.constant 4 : i32
    %143 = arith.mulf %141, %40 : vector<1x128xf32>
    %144 = arith.mulf %142, %44 : vector<1x128xf32>
    %145 = arith.addf %143, %144 : vector<1x128xf32>
    %146 = arith.mulf %141, %42 : vector<1x128xf32>
    %147 = arith.mulf %142, %46 : vector<1x128xf32>
    %148 = arith.addf %146, %147 : vector<1x128xf32>
    %149 = tpu.concatenate %145, %148 in 0 : vector<1x128xf32>, vector<1x128xf32> -> vector<2x128xf32>
    %150 = math.log %149 : vector<2x128xf32>
    %151 = arith.truncf %150 : vector<2x128xf32> to vector<2x128xbf16>
    %c0_37 = arith.constant 0 : index
    %c0_38 = arith.constant 0 : index
    %152 = vector.load %arg11[%c0_37, %c0_38] : memref<128x128xbf16, #tpu.memory_space<vmem>>, vector<128x128xbf16>
    %cst_39 = arith.constant dense<0.000000e+00> : vector<2x128xf32>
    %153 = tpu.matmul %151, %152, %cst_39 {dimension_numbers = #tpu.dot_dimension_numbers<[1], [0], [0], [1], [0, 0, 1, 1], [], []>} : vector<2x128xbf16>, vector<128x128xbf16>, vector<2x128xf32> -> vector<2x128xf32>
    %154 = vector.extract_strided_slice %153 {offsets = [0, 0], sizes = [1, 128], strides = [1, 1]} : vector<2x128xf32> to vector<1x128xf32>
    %155 = arith.addf %37, %154 : vector<1x128xf32>
    %156 = vector.extract_strided_slice %153 {offsets = [1, 0], sizes = [1, 128], strides = [1, 1]} : vector<2x128xf32> to vector<1x128xf32>
    %157 = arith.addf %38, %156 : vector<1x128xf32>
    %158 = arith.maximumf %155, %157 : vector<1x128xf32>
    %159 = arith.subf %155, %158 : vector<1x128xf32>
    %160 = math.exp %159 : vector<1x128xf32>
    %161 = arith.subf %157, %158 : vector<1x128xf32>
    %162 = math.exp %161 : vector<1x128xf32>
    %163 = arith.addf %160, %162 : vector<1x128xf32>
    %164 = tpu.reciprocal %163 {approx = true} : vector<1x128xf32> -> vector<1x128xf32>
    %165 = arith.mulf %160, %164 : vector<1x128xf32>
    %166 = arith.mulf %162, %164 : vector<1x128xf32>
    %167 = tpu.concatenate %165, %166 in 0 : vector<1x128xf32>, vector<1x128xf32> -> vector<2x128xf32>
    %168 = tpu.concatenate %29, %36 in 0 : vector<1x128xf32>, vector<1x128xf32> -> vector<2x128xf32>
    %169 = tpu.concatenate %37, %38 in 0 : vector<1x128xf32>, vector<1x128xf32> -> vector<2x128xf32>
    %170 = arith.mulf %167, %169 : vector<2x128xf32>
    %171 = vector.shape_cast %170 : vector<2x128xf32> to vector<1x2x128xf32>
    %cst_40 = arith.constant dense<0.000000e+00> : vector<1xf32>
    %172 = vector.multi_reduction <add>, %171, %cst_40 [1, 2] : vector<1x2x128xf32> to vector<1xf32>
    %173 = vector.shape_cast %172 : vector<1xf32> to vector<1x1x1xf32>
    %174 = vector.extract %173[0, 0, 0] : f32 from vector<1x1x1xf32>
    %175 = vector.broadcast %174 : f32 to vector<1x1xf32>
    %cst_41 = arith.constant 0.000000e+00 : f32
    %176 = vector.broadcast %cst_41 : f32 to vector<1x1xf32>
    %177 = arith.subf %176, %175 : vector<1x1xf32>
    %c0_42 = arith.constant 0 : index
    %c0_43 = arith.constant 0 : index
    %178 = vector.load %arg8[%c0_42, %c0_43] : memref<1x1xf32, #tpu.memory_space<vmem>>, vector<1x1xf32>
    tpu.vector_store %arg8[%c0_42, %c0_43], %177 {strides = array<i32>} : memref<1x1xf32, #tpu.memory_space<vmem>>, vector<1x1xf32>,
    %c0_44 = arith.constant 0 : index
    %c0_45 = arith.constant 0 : index
    %179 = vector.load %arg9[%c0_44, %c0_45] : memref<2x128xf32, #tpu.memory_space<vmem>>, vector<2x128xf32>
    tpu.vector_store %arg9[%c0_44, %c0_45], %167 {strides = array<i32>} : memref<2x128xf32, #tpu.memory_space<vmem>>, vector<2x128xf32>,
    %c0_46 = arith.constant 0 : index
    %c0_47 = arith.constant 0 : index
    %180 = vector.load %arg10[%c0_46, %c0_47] : memref<2x128xf32, #tpu.memory_space<vmem>>, vector<2x128xf32>
    tpu.vector_store %arg10[%c0_46, %c0_47], %168 {strides = array<i32>} : memref<2x128xf32, #tpu.memory_space<vmem>>, vector<2x128xf32>,
    return
  }
  func.func @transform_0(%arg0: i32) -> (i32, i32) {
    %c0_i32 = arith.constant 0 : i32
    %c0_i32_0 = arith.constant 0 : i32
    %c0_i32_1 = arith.constant 0 : i32
    return %c0_i32, %c0_i32_0 : i32, i32
  }
  func.func @transform_1(%arg0: i32) -> (i32, i32) {
    %c0_i32 = arith.constant 0 : i32
    %c0_i32_0 = arith.constant 0 : i32
    %c0_i32_1 = arith.constant 0 : i32
    return %c0_i32, %c0_i32_0 : i32, i32
  }
  func.func @transform_2(%arg0: i32) -> (i32, i32) {
    %c0_i32 = arith.constant 0 : i32
    %c0_i32_0 = arith.constant 0 : i32
    %c0_i32_1 = arith.constant 0 : i32
    return %c0_i32, %c0_i32_0 : i32, i32
  }
  func.func @transform_3(%arg0: i32) -> (i32, i32) {
    %c0_i32 = arith.constant 0 : i32
    %c0_i32_0 = arith.constant 0 : i32
    %c0_i32_1 = arith.constant 0 : i32
    return %c0_i32, %c0_i32_0 : i32, i32
  }
  func.func @transform_4(%arg0: i32) -> (i32, i32) {
    %c0_i32 = arith.constant 0 : i32
    %c0_i32_0 = arith.constant 0 : i32
    %c0_i32_1 = arith.constant 0 : i32
    return %c0_i32, %c0_i32_0 : i32, i32
  }
  func.func @transform_5(%arg0: i32) -> (i32, i32) {
    %c0_i32 = arith.constant 0 : i32
    %c0_i32_0 = arith.constant 0 : i32
    %c0_i32_1 = arith.constant 0 : i32
    return %c0_i32, %c0_i32_0 : i32, i32
  }
  func.func @transform_7(%arg0: i32) -> (i32, i32) {
    %c0_i32 = arith.constant 0 : i32
    %c0_i32_0 = arith.constant 0 : i32
    %c0_i32_1 = arith.constant 0 : i32
    return %c0_i32, %c0_i32_0 : i32, i32
  }
  func.func @transform_8(%arg0: i32) -> (i32, i32) {
    %c0_i32 = arith.constant 0 : i32
    %c0_i32_0 = arith.constant 0 : i32
    %c0_i32_1 = arith.constant 0 : i32
    return %c0_i32, %c0_i32_0 : i32, i32
  }
  func.func @transform_9(%arg0: i32) -> (i32, i32) {
    %c0_i32 = arith.constant 0 : i32
    %c0_i32_0 = arith.constant 0 : i32
    %c0_i32_1 = arith.constant 0 : i32
    return %c0_i32, %c0_i32_0 : i32, i32
  }
}

</mosaic_0001>

<llo_original>
// kernel: model_forward.1
$region0: #{model_forward.1}
  #allocation0 [shape = 'u32[]', space=smem, size = 0x4, offset = 0x4, fixed_abs, tag = 'smem constant byte address 0x4 - core index']
  #allocation1 [shape = 'u32[144,128]{1,0:T(1,128)}', space=vmem, size = 0x12000, scoped, tag = 'internal scratch']
  #allocation2 [shape = 'bf16[128,128]{1,0:T(16,128)(2,1)}', space=vmem, size = 0x8000, scoped, tag = 'scratch operand']
  #allocation3 [shape = 's32[1]{0}', space=sflag, size = 0x4, scoped, tag = 'scratch operand']
  #allocation11 [shape = 's32[]', space=sflag, size = 0x4, offset = 0, fixed_abs, tag = 'sflag constant byte address 0x0 - dummy sync flag']
  %s0 = inlined_call_operand.vmem [shape: f32[32,128], index: 0, kind: input, shape index: {}]
  %s1 = inlined_call_operand.vmem [shape: f32[64,32], index: 1, kind: input, shape index: {}]
  %s2 = inlined_call_operand.vmem [shape: f32[64,1], index: 2, kind: input, shape index: {}]
  %s3 = inlined_call_operand.vmem [shape: f32[2,64], index: 3, kind: input, shape index: {}]
  %s4 = inlined_call_operand.vmem [shape: f32[2,1], index: 4, kind: input, shape index: {}]
  %s5 = inlined_call_operand.vmem [shape: f32[2,2], index: 5, kind: input, shape index: {}]
  %s6 = inlined_call_operand.vmem [shape: bf16[128,128], index: 6, kind: input, shape index: {}]
  %s7 = inlined_call_operand.hbm [shape: f32[1,1], index: 7, kind: output, shape index: {0}]
  %s8 = inlined_call_operand.hbm [shape: f32[2,128], index: 8, kind: output, shape index: {1}]
  %s9 = inlined_call_operand.hbm [shape: f32[2,128], index: 9, kind: output, shape index: {2}]
  %10 = xla_tuple %s7, %s8, %s9
  %s11 = sld [smem:[#allocation0]]
  $region88: #{model_forward.1} parent=0
    _
  %s13 = ssub.s32 1, %s11
  %s14 = scalar_select 0, %s13, %s11
  $region1: #{model_forward.1} parent=0
    #allocation4 [shape = 'u8[1024]{0}', space=smem, size = 0x400, scoped, tag = 'input window, operand 5, single buffered']
    #allocation5 [shape = 's32[1]{0}', space=sflag, size = 0x4, scoped, tag = 'scoped memory for model_forward.1']
    #allocation6 [shape = 's32[1]{0}', space=sflag, size = 0x4, scoped, tag = 'scoped memory for model_forward.1']
    #allocation7 [shape = 'u8[512]{0}', space=vmem, size = 0x400, scoped, tag = 'output window, operand 0, single buffered']
    #allocation8 [shape = 'u8[1024]{0}', space=vmem, size = 0x400, scoped, tag = 'output window, operand 1, single buffered']
    #allocation9 [shape = 's32[1]{0}', space=sflag, size = 0x4, scoped, tag = 'scoped memory for model_forward.1']
    #allocation10 [shape = 'u8[1024]{0}', space=vmem, size = 0x400, scoped, tag = 'output window, operand 2, single buffered']
    %15 = vsyncpa [#allocation6], 0
    %16 = vsyncpa [#allocation5], 0
    %17 = vsyncpa [#allocation9], 0
    // Predicated region
    $region2: #{model_forward.1} parent=1 // pred_check
      _
    $region3: #{model_forward.1} parent=1 // pred_check_branch
      %19 = sbr.rel (0) target = $region5
    $region4: #{model_forward.1} parent=1 // pred_region
      _
    $region5: #{model_forward.1} parent=1 // pred_fallthru
      _
    // Predicated region
    $region6: #{model_forward.1} parent=1 // pred_check
      _
    $region7: #{model_forward.1} parent=1 // pred_check_branch
      %21 = sbr.rel (0) target = $region9
    $region8: #{model_forward.1} parent=1 // pred_region
      _
    $region9: #{model_forward.1} parent=1 // pred_fallthru
      _
    // Predicated region
    $region10: #{model_forward.1} parent=1 // pred_check
      _
    $region11: #{model_forward.1} parent=1 // pred_check_branch
      %23 = sbr.rel (0) target = $region13
    $region12: #{model_forward.1} parent=1 // pred_region
      _
    $region13: #{model_forward.1} parent=1 // pred_fallthru
      _
    // Predicated region
    $region14: #{model_forward.1} parent=1 // pred_check
      _
    $region15: #{model_forward.1} parent=1 // pred_check_branch
      %25 = sbr.rel (0) target = $region17
    $region16: #{model_forward.1} parent=1 // pred_region
      _
    $region17: #{model_forward.1} parent=1 // pred_fallthru
      _
    // Predicated region
    $region18: #{model_forward.1} parent=1 // pred_check
      _
    $region19: #{model_forward.1} parent=1 // pred_check_branch
      %27 = sbr.rel (0) target = $region21
    $region20: #{model_forward.1} parent=1 // pred_region
      _
    $region21: #{model_forward.1} parent=1 // pred_fallthru
      _
    // Predicated region
    $region22: #{model_forward.1} parent=1 // pred_check
      _
    $region23: #{model_forward.1} parent=1 // pred_check_branch
      %29 = sbr.rel (0) target = $region25
    $region24: #{model_forward.1} parent=1 // pred_region
      %s31 = ssub.s32 32, 32
      %32 = vsyncadd [#allocation6], %s31
      %s34 = sshll.u32 %s5, 4
      %s35 = int_to_ptr.vmem [resolvable:$true] %s34
      %37 = dma.vmem_to_smem %s35, 32, [#allocation4], [#allocation6]
    $region25: #{model_forward.1} parent=1 // pred_fallthru
      _
    // Predicated region
    $region26: #{model_forward.1} parent=1 // pred_check
      _
    $region27: #{model_forward.1} parent=1 // pred_check_branch
      %39 = sbr.rel (0) target = $region29
    $region28: #{model_forward.1} parent=1 // pred_region
      %40 = dma.done [#allocation6], 32
    $region29: #{model_forward.1} parent=1 // pred_fallthru
      _
    %41 = sfence
    %p44 = scmp.lt.u32.totalorder 64, 8
    %p45 = pneg %p44
    // Predicated region
    $region30: #{model_forward.1} parent=1 // pred_check
      _
    $region31: #{model_forward.1} parent=1 // pred_check_branch
      %47 = sbr.rel (%p44) target = $region33
    $region32: #{model_forward.1} parent=1 // pred_region
      %s62 = sand.u32 64, 7
      %p63 = scmp.eq.s32.totalorder %s62, 0
      // Predicated region
      $region45: #{model_forward.1} parent=32 // pred_check
        %p64 = pneg %p63
      $region46: #{model_forward.1} parent=32 // pred_check_branch
        %66 = sbr.rel (%p64) target = $region48
      $region47: #{model_forward.1} parent=32 // pred_region
        loop: start=0, step=1, limit=1
        $region49: #{model_forward.1} parent=47 // loop_pre_header
          _
        $region50: #{model_forward.1} parent=47 // loop_header
          %s68 = sphi 0, %s72
          %p69 = scmp.ge.s32.totalorder %s68, 1
          %s73 = sphi %s6, %s6
          %s74 = sphi [#allocation2], [#allocation2]
        $region51: #{model_forward.1} parent=47 // loop_header_branch
          %71 = sbr.rel (%p69) target = $region55
        $region52: #{model_forward.1} parent=47 // loop_body
          %v75 = vld [vmem:[%s73] sm:$0xff]
          %76 = vst [vmem:[%s74] sm:$0xff] %v75
          %v77 = vld [vmem:[%s73 + $0x8] sm:$0xff]
          %78 = vst [vmem:[%s74 + $0x8] sm:$0xff] %v77
          %v79 = vld [vmem:[%s73 + $0x10] sm:$0xff]
          %80 = vst [vmem:[%s74 + $0x10] sm:$0xff] %v79
          %v81 = vld [vmem:[%s73 + $0x18] sm:$0xff]
          %82 = vst [vmem:[%s74 + $0x18] sm:$0xff] %v81
          %v83 = vld [vmem:[%s73 + $0x20] sm:$0xff]
          %84 = vst [vmem:[%s74 + $0x20] sm:$0xff] %v83
          %v85 = vld [vmem:[%s73 + $0x28] sm:$0xff]
          %86 = vst [vmem:[%s74 + $0x28] sm:$0xff] %v85
          %v87 = vld [vmem:[%s73 + $0x30] sm:$0xff]
          %88 = vst [vmem:[%s74 + $0x30] sm:$0xff] %v87
          %v89 = vld [vmem:[%s73 + $0x38] sm:$0xff]
          %90 = vst [vmem:[%s74 + $0x38] sm:$0xff] %v89
        $region53: #{model_forward.1} parent=47 // loop_footer
          %s72 = sadd.s32 1, %s68
        $region54: #{model_forward.1} parent=47 // loop_footer_branch
          %67 = sbr.rel target = $region50
        $region55: #{model_forward.1} parent=47 // loop_exit
          _
      $region48: #{model_forward.1} parent=32 // pred_fallthru
        _
      %p91 = pneg %p63
      // Predicated region
      $region56: #{model_forward.1} parent=32 // pred_check
        _
      $region57: #{model_forward.1} parent=32 // pred_check_branch
        %93 = sbr.rel (%p63) target = $region59
      $region58: #{model_forward.1} parent=32 // pred_region
        %s94 = sand.u32 64, 7
      $region59: #{model_forward.1} parent=32 // pred_fallthru
        _
    $region33: #{model_forward.1} parent=1 // pred_fallthru
      _
    // Predicated region
    $region34: #{model_forward.1} parent=1 // pred_check
      %p48 = pneg %p44
    $region35: #{model_forward.1} parent=1 // pred_check_branch
      %50 = sbr.rel (%p48) target = $region37
    $region36: #{model_forward.1} parent=1 // pred_region
      %s51 = sshllo.u32 0, 64
      loop: start=0, step=1, limit=1
      $region38: #{model_forward.1} parent=36 // loop_pre_header
        _
      $region39: #{model_forward.1} parent=36 // loop_header
        %s53 = sphi 0, %s57
        %p54 = scmp.ge.s32.totalorder %s53, 1
        %s58 = sphi %s6, %s6
        %s59 = sphi [#allocation2], [#allocation2]
      $region40: #{model_forward.1} parent=36 // loop_header_branch
        %56 = sbr.rel (%p54) target = $region44
      $region41: #{model_forward.1} parent=36 // loop_body
        %v60 = vld [vmem:[%s58] sm:%s51]
        %61 = vst [vmem:[%s59] sm:%s51] %v60
      $region42: #{model_forward.1} parent=36 // loop_footer
        %s57 = sadd.s32 1, %s53
      $region43: #{model_forward.1} parent=36 // loop_footer_branch
        %52 = sbr.rel target = $region39
      $region44: #{model_forward.1} parent=36 // loop_exit
        _
    $region37: #{model_forward.1} parent=1 // pred_fallthru
      _
    // Predicated region
    $region60: #{model_forward.1} parent=1 // pred_check
      _
    $region61: #{model_forward.1} parent=1 // pred_check_branch
      %97 = sbr.rel (0) target = $region63
    $region62: #{model_forward.1} parent=1 // pred_region
      %98 = vsyncadd [#allocation3], 1024
    $region63: #{model_forward.1} parent=1 // pred_fallthru
      _
    %v99 = vld [vmem:[%s1] sm:$0xff]
    %v100 = vld [vmem:[%s1 + $0x8] sm:$0xff]
    %v101 = vld [vmem:[%s1 + $0x10] sm:$0xff]
    %v102 = vld [vmem:[%s1 + $0x18] sm:$0xff]
    %v103 = vld [vmem:[%s1 + $0x20] sm:$0xff]
    %v104 = vld [vmem:[%s1 + $0x28] sm:$0xff]
    %v105 = vld [vmem:[%s1 + $0x30] sm:$0xff]
    %v106 = vld [vmem:[%s1 + $0x38] sm:$0xff]
    %v107 = vld [vmem:[%s0] sm:$0xff]
    %v108 = vld [vmem:[%s0 + $0x8] sm:$0xff]
    %v109 = vld [vmem:[%s0 + $0x10] sm:$0xff]
    %v110 = vld [vmem:[%s0 + $0x18] sm:$0xff]
    %v111 = vld [vmem:[%s2] sm:$0xff]
    %v112 = vld [vmem:[%s2 + $0x8] sm:$0xff]
    %v113 = vld [vmem:[%s2 + $0x10] sm:$0xff]
    %v114 = vld [vmem:[%s2 + $0x18] sm:$0xff]
    %v115 = vld [vmem:[%s2 + $0x20] sm:$0xff]
    %v116 = vld [vmem:[%s2 + $0x28] sm:$0xff]
    %v117 = vld [vmem:[%s2 + $0x30] sm:$0xff]
    %v118 = vld [vmem:[%s2 + $0x38] sm:$0xff]
    %120 = vset.pattern.permute.xlu0 0
    %121 = vperm.xlu0 %120, %v111
    %v122 = vpop.permute.xlu0 %121
    %125 = vset.pattern.permute.xlu0 0
    %126 = vperm.xlu0 %125, %v112
    %v127 = vpop.permute.xlu0 %126
    %130 = vset.pattern.permute.xlu0 0
    %131 = vperm.xlu0 %130, %v113
    %v132 = vpop.permute.xlu0 %131
    %135 = vset.pattern.permute.xlu0 0
    %136 = vperm.xlu0 %135, %v114
    %v137 = vpop.permute.xlu0 %136
    %140 = vset.pattern.permute.xlu0 0
    %141 = vperm.xlu0 %140, %v115
    %v142 = vpop.permute.xlu0 %141
    %145 = vset.pattern.permute.xlu0 0
    %146 = vperm.xlu0 %145, %v116
    %v147 = vpop.permute.xlu0 %146
    %150 = vset.pattern.permute.xlu0 0
    %151 = vperm.xlu0 %150, %v117
    %v152 = vpop.permute.xlu0 %151
    %155 = vset.pattern.permute.xlu0 0
    %156 = vperm.xlu0 %155, %v118
    %v157 = vpop.permute.xlu0 %156
    %vm159 = vcmask 261120
    %v161 = vsel %vm159, %v99, 0
    %v164 = vsel %vm159, %v100, 0
    %v167 = vsel %vm159, %v101, 0
    %v170 = vsel %vm159, %v102, 0
    %v173 = vsel %vm159, %v103, 0
    %v176 = vsel %vm159, %v104, 0
    %v179 = vsel %vm159, %v105, 0
    %v182 = vsel %vm159, %v106, 0
    %184 = vmatprep.subr.mxu0 0.0
    %185 = vmatpush1.msra.mxu0 %v107
    %186 = vmatprep.subr.mxu0 0.0
    %187 = vmatpush1.msra.mxu0 %v108
    %188 = vmatprep.subr.mxu0 0.0
    %189 = vmatpush1.msra.mxu0 %v109
    %190 = vmatprep.subr.mxu0 0.0
    %191 = vmatpush1.msra.mxu0 %v110
    %192 = vmatprep.subr.mxu0 0.0
    %193 = vmatpush1.msra.mxu0 0.0
    %194 = vmatprep.subr.mxu0 0.0
    %195 = vmatpush1.msra.mxu0 0.0
    %196 = vmatprep.subr.mxu0 0.0
    %197 = vmatpush1.msra.mxu0 0.0
    %198 = vmatprep.subr.mxu0 0.0
    %199 = vmatpush1.msra.mxu0 0.0
    %200 = vmatprep.subr.mxu0 0.0
    %201 = vmatpush1.msra.mxu0 0.0
    %202 = vmatprep.subr.mxu0 0.0
    %203 = vmatpush1.msra.mxu0 0.0
    %204 = vmatprep.subr.mxu0 0.0
    %205 = vmatpush1.msra.mxu0 0.0
    %206 = vmatprep.subr.mxu0 0.0
    %207 = vmatpush1.msra.mxu0 0.0
    %208 = vmatprep.subr.mxu0 0.0
    %209 = vmatpush1.msra.mxu0 0.0
    %210 = vmatprep.subr.mxu0 0.0
    %211 = vmatpush1.msra.mxu0 0.0
    %212 = vmatprep.subr.mxu0 0.0
    %213 = vmatpush1.msra.mxu0 0.0
    %214 = vmatprep.subr.mxu0 0.0
    %215 = vmatpush1.msra.mxu0 0.0
    %216 = vmatprep.subr.mxu0 0.0
    %217 = vmatpush1.msra.mxu0 0.0
    %218 = vmatprep.subr.mxu0 0.0
    %219 = vmatpush1.msra.mxu0 0.0
    %220 = vmatprep.subr.mxu0 0.0
    %221 = vmatpush1.msra.mxu0 0.0
    %222 = vmatprep.subr.mxu0 0.0
    %223 = vmatpush1.msra.mxu0 0.0
    %224 = vmatprep.subr.mxu0 0.0
    %225 = vmatpush1.msra.mxu0 0.0
    %226 = vmatprep.subr.mxu0 0.0
    %227 = vmatpush1.msra.mxu0 0.0
    %228 = vmatprep.subr.mxu0 0.0
    %229 = vmatpush1.msra.mxu0 0.0
    %230 = vmatprep.subr.mxu0 0.0
    %231 = vmatpush1.msra.mxu0 0.0
    %232 = vmatprep.subr.mxu0 0.0
    %233 = vmatpush1.msra.mxu0 0.0
    %234 = vmatprep.subr.mxu0 0.0
    %235 = vmatpush1.msra.mxu0 0.0
    %236 = vmatprep.subr.mxu0 0.0
    %237 = vmatpush1.msra.mxu0 0.0
    %238 = vmatprep.subr.mxu0 0.0
    %239 = vmatpush1.msra.mxu0 0.0
    %240 = vmatprep.subr.mxu0 0.0
    %241 = vmatpush1.msra.mxu0 0.0
    %242 = vmatprep.subr.mxu0 0.0
    %243 = vmatpush1.msra.mxu0 0.0
    %244 = vmatprep.subr.mxu0 0.0
    %245 = vmatpush1.msra.mxu0 0.0
    %246 = vmatprep.subr.mxu0 0.0
    %247 = vmatpush1.msra.mxu0 0.0
    %248 = vmatprep.mubr.f32.mxu0 0.0
    %249 = vmatmul.mubr.f32.gmra.mrb[0].mxu0 %v161
    %v250 = vpop.f32.mrb[0].mxu0
    %v251 = vadd.f32 %v122, %v250
    %v252 = vpop.f32.mrb[0].mxu0
    %253 = vmatprep.mubr.f32.mxu0 0.0
    %254 = vmatmul.mubr.f32.gmra.mrb[0].mxu0 %v164
    %v255 = vpop.f32.mrb[0].mxu0
    %v256 = vadd.f32 %v127, %v255
    %v257 = vpop.f32.mrb[0].mxu0
    %258 = vmatprep.mubr.f32.mxu0 0.0
    %259 = vmatmul.mubr.f32.gmra.mrb[0].mxu0 %v167
    %v260 = vpop.f32.mrb[0].mxu0
    %v261 = vadd.f32 %v132, %v260
    %v262 = vpop.f32.mrb[0].mxu0
    %263 = vmatprep.mubr.f32.mxu0 0.0
    %264 = vmatmul.mubr.f32.gmra.mrb[0].mxu0 %v170
    %v265 = vpop.f32.mrb[0].mxu0
    %v266 = vadd.f32 %v137, %v265
    %v267 = vpop.f32.mrb[0].mxu0
    %268 = vmatprep.mubr.f32.mxu0 0.0
    %269 = vmatmul.mubr.f32.gmra.mrb[0].mxu0 %v173
    %v270 = vpop.f32.mrb[0].mxu0
    %v271 = vadd.f32 %v142, %v270
    %v272 = vpop.f32.mrb[0].mxu0
    %273 = vmatprep.mubr.f32.mxu0 0.0
    %274 = vmatmul.mubr.f32.gmra.mrb[0].mxu0 %v176
    %v275 = vpop.f32.mrb[0].mxu0
    %v276 = vadd.f32 %v147, %v275
    %v277 = vpop.f32.mrb[0].mxu0
    %278 = vmatprep.mubr.f32.mxu0 0.0
    %279 = vmatmul.mubr.f32.gmra.mrb[0].mxu0 %v179
    %v280 = vpop.f32.mrb[0].mxu0
    %v281 = vadd.f32 %v152, %v280
    %v282 = vpop.f32.mrb[0].mxu0
    %283 = vmatprep.mubr.f32.mxu0 0.0
    %284 = vmatmul.mubr.f32.gmra.mrb[0].mxu0 %v182
    %v285 = vpop.f32.mrb[0].mxu0
    %v286 = vadd.f32 %v157, %v285
    %v287 = vpop.f32.mrb[0].mxu0
    %288 = vdwg.mxu0
    %v289 = vmax.f32 %v251, 0.0
    %v290 = vmax.f32 %v256, 0.0
    %v291 = vmax.f32 %v261, 0.0
    %v292 = vmax.f32 %v266, 0.0
    %v293 = vmax.f32 %v271, 0.0
    %v294 = vmax.f32 %v276, 0.0
    %v295 = vmax.f32 %v281, 0.0
    %v296 = vmax.f32 %v286, 0.0
    %v297 = vld [vmem:[%s3] sm:$0x3]
    %v298 = vld [vmem:[%s4] sm:$0x3]
    %300 = vset.pattern.permute.xlu0 0
    %301 = vperm.xlu0 %300, %v298
    %v302 = vpop.permute.xlu0 %301
    %vm304 = vcmask 523264
    %v306 = vsel %vm304, %v297, 0
    %308 = vmatprep.subr.mxu0 0.0
    %309 = vmatpush1.msra.mxu0 %v289
    %310 = vmatprep.subr.mxu0 0.0
    %311 = vmatpush1.msra.mxu0 %v290
    %312 = vmatprep.subr.mxu0 0.0
    %313 = vmatpush1.msra.mxu0 %v291
    %314 = vmatprep.subr.mxu0 0.0
    %315 = vmatpush1.msra.mxu0 %v292
    %316 = vmatprep.subr.mxu0 0.0
    %317 = vmatpush1.msra.mxu0 %v293
    %318 = vmatprep.subr.mxu0 0.0
    %319 = vmatpush1.msra.mxu0 %v294
    %320 = vmatprep.subr.mxu0 0.0
    %321 = vmatpush1.msra.mxu0 %v295
    %322 = vmatprep.subr.mxu0 0.0
    %323 = vmatpush1.msra.mxu0 %v296
    %324 = vmatprep.subr.mxu0 0.0
    %325 = vmatpush1.msra.mxu0 0.0
    %326 = vmatprep.subr.mxu0 0.0
    %327 = vmatpush1.msra.mxu0 0.0
    %328 = vmatprep.subr.mxu0 0.0
    %329 = vmatpush1.msra.mxu0 0.0
    %330 = vmatprep.subr.mxu0 0.0
    %331 = vmatpush1.msra.mxu0 0.0
    %332 = vmatprep.subr.mxu0 0.0
    %333 = vmatpush1.msra.mxu0 0.0
    %334 = vmatprep.subr.mxu0 0.0
    %335 = vmatpush1.msra.mxu0 0.0
    %336 = vmatprep.subr.mxu0 0.0
    %337 = vmatpush1.msra.mxu0 0.0
    %338 = vmatprep.subr.mxu0 0.0
    %339 = vmatpush1.msra.mxu0 0.0
    %340 = vmatprep.subr.mxu0 0.0
    %341 = vmatpush1.msra.mxu0 0.0
    %342 = vmatprep.subr.mxu0 0.0
    %343 = vmatpush1.msra.mxu0 0.0
    %344 = vmatprep.subr.mxu0 0.0
    %345 = vmatpush1.msra.mxu0 0.0
    %346 = vmatprep.subr.mxu0 0.0
    %347 = vmatpush1.msra.mxu0 0.0
    %348 = vmatprep.subr.mxu0 0.0
    %349 = vmatpush1.msra.mxu0 0.0
    %350 = vmatprep.subr.mxu0 0.0
    %351 = vmatpush1.msra.mxu0 0.0
    %352 = vmatprep.subr.mxu0 0.0
    %353 = vmatpush1.msra.mxu0 0.0
    %354 = vmatprep.subr.mxu0 0.0
    %355 = vmatpush1.msra.mxu0 0.0
    %356 = vmatprep.subr.mxu0 0.0
    %357 = vmatpush1.msra.mxu0 0.0
    %358 = vmatprep.subr.mxu0 0.0
    %359 = vmatpush1.msra.mxu0 0.0
    %360 = vmatprep.subr.mxu0 0.0
    %361 = vmatpush1.msra.mxu0 0.0
    %362 = vmatprep.subr.mxu0 0.0
    %363 = vmatpush1.msra.mxu0 0.0
    %364 = vmatprep.subr.mxu0 0.0
    %365 = vmatpush1.msra.mxu0 0.0
    %366 = vmatprep.subr.mxu0 0.0
    %367 = vmatpush1.msra.mxu0 0.0
    %368 = vmatprep.subr.mxu0 0.0
    %369 = vmatpush1.msra.mxu0 0.0
    %370 = vmatprep.subr.mxu0 0.0
    %371 = vmatpush1.msra.mxu0 0.0
    %372 = vmatprep.mubr.f32.mxu0 0.0
    %373 = vmatmul.mubr.f32.gmra.mrb[0].mxu0 %v306
    %v374 = vpop.f32.mrb[0].mxu0
    %v375 = vadd.f32 %v302, %v374
    %v376 = vpop.f32.mrb[0].mxu0
    %377 = vdwg.mxu0
    %v379 = vrot.slane %v375, 1
    %v381 = vmax.f32 %v375, %v379
    %v382 = vsub.f32 %v375, %v381
    %v383 = vmul.f32 %v382, 1.442695
    %v384 = vpow.pop %v383
    %v386 = vrot.slane %v381, 7
    %v388 = vsub.f32 %v375, %v386
    %v389 = vmul.f32 %v388, 1.442695
    %v390 = vpow.pop %v389
    %v392 = vrot.slane %v390, 1
    %v394 = vadd.f32 %v384, %v392
    %v395 = vrcp.pop %v394
    %v396 = vmul.f32 1.0, %v395
    %v397 = vmul.f32 %v384, %v396
    %v398 = vmax.f32 %v397, 0.01
    %v399 = vmin.f32 %v398, 0.99
    %v400 = vadd.f32 %v399, 1e-09
    %v402 = vrot.slane %v396, 7
    %v404 = vmul.f32 %v390, %v402
    %v405 = vmax.f32 %v404, 0.01
    %v406 = vmin.f32 %v405, 0.99
    %v407 = vadd.f32 %v406, 1e-09
    %v408 = vlog2.pop %v400
    %v409 = vmul.f32 %v408, 0.6931472
    %v410 = vlog2.pop %v407
    %v411 = vmul.f32 %v410, 0.6931472
    %s412 = sld [smem:[#allocation4]]
    %v413 = vstv %s412
    %s414 = sld [smem:[#allocation4 + $0x1]]
    %v415 = vstv %s414
    %s416 = sld [smem:[#allocation4 + $0x80]]
    %v417 = vstv %s416
    %s418 = sld [smem:[#allocation4 + $0x81]]
    %v419 = vstv %s418
    %s420 = smul.u32 4, 16
    %s421 = smul.u32 %s420, 1
    %s422 = sshll.u32 %s421, 4
    %423 = dma.done [#allocation3], %s422
    %v424 = vmul.f32 %v400, %v413
    %v425 = vmul.f32 %v407, %v417
    %v427 = vrot.slane %v425, 1
    %v429 = vadd.f32 %v424, %v427
    %v430 = vmul.f32 %v400, %v415
    %v431 = vmul.f32 %v407, %v419
    %v433 = vrot.slane %v431, 1
    %v435 = vadd.f32 %v430, %v433
    %v437 = vrot.slane %v435, 7
    %vm439 = vcmask 1040384
    %v440 = vsel %vm439, %v429, %v437
    %v441 = vlog2.pop %v440
    %v442 = vmul.f32 %v441, 0.6931472
    %v443 = vpack.c.bf16 %v442, %v442
    %v444 = vld [vmem:[#allocation2] sm:$0xff]
    %v445 = vld [vmem:[#allocation2 + $0x8] sm:$0xff]
    %v446 = vld [vmem:[#allocation2 + $0x10] sm:$0xff]
    %v447 = vld [vmem:[#allocation2 + $0x18] sm:$0xff]
    %v448 = vld [vmem:[#allocation2 + $0x20] sm:$0xff]
    %v449 = vld [vmem:[#allocation2 + $0x28] sm:$0xff]
    %v450 = vld [vmem:[#allocation2 + $0x30] sm:$0xff]
    %v451 = vld [vmem:[#allocation2 + $0x38] sm:$0xff]
    %452 = vmatprep.subr.bf16.mxu0 0
    %453 = vmatpush1.bf16.msra.mxu0 %v444
    %454 = vmatprep.subr.bf16.mxu0 0
    %455 = vmatpush1.bf16.msra.mxu0 %v445
    %456 = vmatprep.subr.bf16.mxu0 0
    %457 = vmatpush1.bf16.msra.mxu0 %v446
    %458 = vmatprep.subr.bf16.mxu0 0
    %459 = vmatpush1.bf16.msra.mxu0 %v447
    %460 = vmatprep.subr.bf16.mxu0 0
    %461 = vmatpush1.bf16.msra.mxu0 %v448
    %462 = vmatprep.subr.bf16.mxu0 0
    %463 = vmatpush1.bf16.msra.mxu0 %v449
    %464 = vmatprep.subr.bf16.mxu0 0
    %465 = vmatpush1.bf16.msra.mxu0 %v450
    %466 = vmatprep.subr.bf16.mxu0 0
    %467 = vmatpush1.bf16.msra.mxu0 %v451
    %468 = vmatprep.subr.bf16.mxu0 0
    %469 = vmatpush1.bf16.msra.mxu0 0
    %470 = vmatprep.subr.bf16.mxu0 0
    %471 = vmatpush1.bf16.msra.mxu0 0
    %472 = vmatprep.subr.bf16.mxu0 0
    %473 = vmatpush1.bf16.msra.mxu0 0
    %474 = vmatprep.subr.bf16.mxu0 0
    %475 = vmatpush1.bf16.msra.mxu0 0
    %476 = vmatprep.subr.bf16.mxu0 0
    %477 = vmatpush1.bf16.msra.mxu0 0
    %478 = vmatprep.subr.bf16.mxu0 0
    %479 = vmatpush1.bf16.msra.mxu0 0
    %480 = vmatprep.subr.bf16.mxu0 0
    %481 = vmatpush1.bf16.msra.mxu0 0
    %482 = vmatprep.subr.bf16.mxu0 0
    %483 = vmatpush1.bf16.msra.mxu0 0
    %484 = vmatprep.mubr.bf16.mxu0 0
    %485 = vmatmul.mubr.bf16.gmra.mrb[0].mxu0 %v443
    %v486 = vpop.f32.mrb[0].mxu0
    %v487 = vadd.f32 0.0, %v486
    %v488 = vpop.f32.mrb[0].mxu0
    %v489 = vpop.f32.mrb[0].mxu0
    %v490 = vpop.f32.mrb[0].mxu0
    %491 = vdwg.mxu0
    %v492 = vadd.f32 %v409, %v487
    %v493 = vadd.f32 %v411, %v487
    %v495 = vrot.slane %v493, 1
    %v497 = vmax.f32 %v492, %v495
    %v498 = vsub.f32 %v492, %v497
    %v499 = vmul.f32 %v498, 1.442695
    %v500 = vpow.pop %v499
    %v502 = vrot.slane %v497, 7
    %v504 = vsub.f32 %v493, %v502
    %v505 = vmul.f32 %v504, 1.442695
    %v506 = vpow.pop %v505
    %v508 = vrot.slane %v506, 1
    %v510 = vadd.f32 %v500, %v508
    %v511 = vrcp.pop %v510
    %v512 = vmul.f32 %v500, %v511
    %v514 = vrot.slane %v511, 7
    %v516 = vmul.f32 %v506, %v514
    %v517 = vmul.f32 %v512, %v413
    %v518 = vmul.f32 %v516, %v417
    %v520 = vrot.slane %v518, 1
    %v522 = vadd.f32 %v517, %v520
    %v523 = vmul.f32 %v512, %v415
    %v524 = vmul.f32 %v516, %v419
    %v526 = vrot.slane %v524, 1
    %v528 = vadd.f32 %v523, %v526
    %v530 = vrot.slane %v528, 7
    %v532 = vsel %vm439, %v522, %v530
    %v533 = vlog2.pop %v532
    %v534 = vmul.f32 %v533, 0.6931472
    %v535 = vpack.c.bf16 %v534, %v534
    %536 = vmatprep.subr.bf16.mxu0 0
    %537 = vmatpush1.bf16.msra.mxu0 %v444
    %538 = vmatprep.subr.bf16.mxu0 0
    %539 = vmatpush1.bf16.msra.mxu0 %v445
    %540 = vmatprep.subr.bf16.mxu0 0
    %541 = vmatpush1.bf16.msra.mxu0 %v446
    %542 = vmatprep.subr.bf16.mxu0 0
    %543 = vmatpush1.bf16.msra.mxu0 %v447
    %544 = vmatprep.subr.bf16.mxu0 0
    %545 = vmatpush1.bf16.msra.mxu0 %v448
    %546 = vmatprep.subr.bf16.mxu0 0
    %547 = vmatpush1.bf16.msra.mxu0 %v449
    %548 = vmatprep.subr.bf16.mxu0 0
    %549 = vmatpush1.bf16.msra.mxu0 %v450
    %550 = vmatprep.subr.bf16.mxu0 0
    %551 = vmatpush1.bf16.msra.mxu0 %v451
    %552 = vmatprep.subr.bf16.mxu0 0
    %553 = vmatpush1.bf16.msra.mxu0 0
    %554 = vmatprep.subr.bf16.mxu0 0
    %555 = vmatpush1.bf16.msra.mxu0 0
    %556 = vmatprep.subr.bf16.mxu0 0
    %557 = vmatpush1.bf16.msra.mxu0 0
    %558 = vmatprep.subr.bf16.mxu0 0
    %559 = vmatpush1.bf16.msra.mxu0 0
    %560 = vmatprep.subr.bf16.mxu0 0
    %561 = vmatpush1.bf16.msra.mxu0 0
    %562 = vmatprep.subr.bf16.mxu0 0
    %563 = vmatpush1.bf16.msra.mxu0 0
    %564 = vmatprep.subr.bf16.mxu0 0
    %565 = vmatpush1.bf16.msra.mxu0 0
    %566 = vmatprep.subr.bf16.mxu0 0
    %567 = vmatpush1.bf16.msra.mxu0 0
    %568 = vmatprep.mubr.bf16.mxu0 0
    %569 = vmatmul.mubr.bf16.gmra.mrb[0].mxu0 %v535
    %v570 = vpop.f32.mrb[0].mxu0
    %v571 = vadd.f32 0.0, %v570
    %v572 = vpop.f32.mrb[0].mxu0
    %v573 = vpop.f32.mrb[0].mxu0
    %v574 = vpop.f32.mrb[0].mxu0
    %575 = vdwg.mxu0
    %v576 = vadd.f32 %v409, %v571
    %v577 = vadd.f32 %v411, %v571
    %v579 = vrot.slane %v577, 1
    %v581 = vmax.f32 %v576, %v579
    %v582 = vsub.f32 %v576, %v581
    %v583 = vmul.f32 %v582, 1.442695
    %v584 = vpow.pop %v583
    %v586 = vrot.slane %v581, 7
    %v588 = vsub.f32 %v577, %v586
    %v589 = vmul.f32 %v588, 1.442695
    %v590 = vpow.pop %v589
    %v592 = vrot.slane %v590, 1
    %v594 = vadd.f32 %v584, %v592
    %v595 = vrcp.pop %v594
    %v596 = vmul.f32 %v584, %v595
    %v598 = vrot.slane %v595, 7
    %v600 = vmul.f32 %v590, %v598
    %v601 = vmul.f32 %v596, %v413
    %v602 = vmul.f32 %v600, %v417
    %v604 = vrot.slane %v602, 1
    %v606 = vadd.f32 %v601, %v604
    %v607 = vmul.f32 %v596, %v415
    %v608 = vmul.f32 %v600, %v419
    %v610 = vrot.slane %v608, 1
    %v612 = vadd.f32 %v607, %v610
    %v614 = vrot.slane %v612, 7
    %v616 = vsel %vm439, %v606, %v614
    %v617 = vlog2.pop %v616
    %v618 = vmul.f32 %v617, 0.6931472
    %v619 = vpack.c.bf16 %v618, %v618
    %620 = vmatprep.subr.bf16.mxu0 0
    %621 = vmatpush1.bf16.msra.mxu0 %v444
    %622 = vmatprep.subr.bf16.mxu0 0
    %623 = vmatpush1.bf16.msra.mxu0 %v445
    %624 = vmatprep.subr.bf16.mxu0 0
    %625 = vmatpush1.bf16.msra.mxu0 %v446
    %626 = vmatprep.subr.bf16.mxu0 0
    %627 = vmatpush1.bf16.msra.mxu0 %v447
    %628 = vmatprep.subr.bf16.mxu0 0
    %629 = vmatpush1.bf16.msra.mxu0 %v448
    %630 = vmatprep.subr.bf16.mxu0 0
    %631 = vmatpush1.bf16.msra.mxu0 %v449
    %632 = vmatprep.subr.bf16.mxu0 0
    %633 = vmatpush1.bf16.msra.mxu0 %v450
    %634 = vmatprep.subr.bf16.mxu0 0
    %635 = vmatpush1.bf16.msra.mxu0 %v451
    %636 = vmatprep.subr.bf16.mxu0 0
    %637 = vmatpush1.bf16.msra.mxu0 0
    %638 = vmatprep.subr.bf16.mxu0 0
    %639 = vmatpush1.bf16.msra.mxu0 0
    %640 = vmatprep.subr.bf16.mxu0 0
    %641 = vmatpush1.bf16.msra.mxu0 0
    %642 = vmatprep.subr.bf16.mxu0 0
    %643 = vmatpush1.bf16.msra.mxu0 0
    %644 = vmatprep.subr.bf16.mxu0 0
    %645 = vmatpush1.bf16.msra.mxu0 0
    %646 = vmatprep.subr.bf16.mxu0 0
    %647 = vmatpush1.bf16.msra.mxu0 0
    %648 = vmatprep.subr.bf16.mxu0 0
    %649 = vmatpush1.bf16.msra.mxu0 0
    %650 = vmatprep.subr.bf16.mxu0 0
    %651 = vmatpush1.bf16.msra.mxu0 0
    %652 = vmatprep.mubr.bf16.mxu0 0
    %653 = vmatmul.mubr.bf16.gmra.mrb[0].mxu0 %v619
    %v654 = vpop.f32.mrb[0].mxu0
    %v655 = vadd.f32 0.0, %v654
    %v656 = vpop.f32.mrb[0].mxu0
    %v657 = vpop.f32.mrb[0].mxu0
    %v658 = vpop.f32.mrb[0].mxu0
    %659 = vdwg.mxu0
    %v660 = vadd.f32 %v409, %v655
    %v661 = vadd.f32 %v411, %v655
    %v663 = vrot.slane %v661, 1
    %v665 = vmax.f32 %v660, %v663
    %v666 = vsub.f32 %v660, %v665
    %v667 = vmul.f32 %v666, 1.442695
    %v668 = vpow.pop %v667
    %v670 = vrot.slane %v665, 7
    %v672 = vsub.f32 %v661, %v670
    %v673 = vmul.f32 %v672, 1.442695
    %v674 = vpow.pop %v673
    %v676 = vrot.slane %v674, 1
    %v678 = vadd.f32 %v668, %v676
    %v679 = vrcp.pop %v678
    %v680 = vmul.f32 %v668, %v679
    %v682 = vrot.slane %v679, 7
    %v684 = vmul.f32 %v674, %v682
    %v685 = vmul.f32 %v680, %v413
    %v686 = vmul.f32 %v684, %v417
    %v688 = vrot.slane %v686, 1
    %v690 = vadd.f32 %v685, %v688
    %v691 = vmul.f32 %v680, %v415
    %v692 = vmul.f32 %v684, %v419
    %v694 = vrot.slane %v692, 1
    %v696 = vadd.f32 %v691, %v694
    %v698 = vrot.slane %v696, 7
    %v700 = vsel %vm439, %v690, %v698
    %v701 = vlog2.pop %v700
    %v702 = vmul.f32 %v701, 0.6931472
    %v703 = vpack.c.bf16 %v702, %v702
    %704 = vmatprep.subr.bf16.mxu0 0
    %705 = vmatpush1.bf16.msra.mxu0 %v444
    %706 = vmatprep.subr.bf16.mxu0 0
    %707 = vmatpush1.bf16.msra.mxu0 %v445
    %708 = vmatprep.subr.bf16.mxu0 0
    %709 = vmatpush1.bf16.msra.mxu0 %v446
    %710 = vmatprep.subr.bf16.mxu0 0
    %711 = vmatpush1.bf16.msra.mxu0 %v447
    %712 = vmatprep.subr.bf16.mxu0 0
    %713 = vmatpush1.bf16.msra.mxu0 %v448
    %714 = vmatprep.subr.bf16.mxu0 0
    %715 = vmatpush1.bf16.msra.mxu0 %v449
    %716 = vmatprep.subr.bf16.mxu0 0
    %717 = vmatpush1.bf16.msra.mxu0 %v450
    %718 = vmatprep.subr.bf16.mxu0 0
    %719 = vmatpush1.bf16.msra.mxu0 %v451
    %720 = vmatprep.subr.bf16.mxu0 0
    %721 = vmatpush1.bf16.msra.mxu0 0
    %722 = vmatprep.subr.bf16.mxu0 0
    %723 = vmatpush1.bf16.msra.mxu0 0
    %724 = vmatprep.subr.bf16.mxu0 0
    %725 = vmatpush1.bf16.msra.mxu0 0
    %726 = vmatprep.subr.bf16.mxu0 0
    %727 = vmatpush1.bf16.msra.mxu0 0
    %728 = vmatprep.subr.bf16.mxu0 0
    %729 = vmatpush1.bf16.msra.mxu0 0
    %730 = vmatprep.subr.bf16.mxu0 0
    %731 = vmatpush1.bf16.msra.mxu0 0
    %732 = vmatprep.subr.bf16.mxu0 0
    %733 = vmatpush1.bf16.msra.mxu0 0
    %734 = vmatprep.subr.bf16.mxu0 0
    %735 = vmatpush1.bf16.msra.mxu0 0
    %736 = vmatprep.mubr.bf16.mxu0 0
    %737 = vmatmul.mubr.bf16.gmra.mrb[0].mxu0 %v703
    %v738 = vpop.f32.mrb[0].mxu0
    %v739 = vadd.f32 0.0, %v738
    %v740 = vpop.f32.mrb[0].mxu0
    %v741 = vpop.f32.mrb[0].mxu0
    %v742 = vpop.f32.mrb[0].mxu0
    %743 = vdwg.mxu0
    %v744 = vadd.f32 %v409, %v739
    %v745 = vadd.f32 %v411, %v739
    %v747 = vrot.slane %v745, 1
    %v749 = vmax.f32 %v744, %v747
    %v750 = vsub.f32 %v744, %v749
    %v751 = vmul.f32 %v750, 1.442695
    %v752 = vpow.pop %v751
    %v754 = vrot.slane %v749, 7
    %v756 = vsub.f32 %v745, %v754
    %v757 = vmul.f32 %v756, 1.442695
    %v758 = vpow.pop %v757
    %v760 = vrot.slane %v758, 1
    %v762 = vadd.f32 %v752, %v760
    %v763 = vrcp.pop %v762
    %v764 = vmul.f32 %v752, %v763
    %v766 = vrot.slane %v763, 7
    %v768 = vmul.f32 %v758, %v766
    %v769 = vmul.f32 %v764, %v413
    %v770 = vmul.f32 %v768, %v417
    %v772 = vrot.slane %v770, 1
    %v774 = vadd.f32 %v769, %v772
    %v775 = vmul.f32 %v764, %v415
    %v776 = vmul.f32 %v768, %v419
    %v778 = vrot.slane %v776, 1
    %v780 = vadd.f32 %v775, %v778
    %v782 = vrot.slane %v780, 7
    %v784 = vsel %vm439, %v774, %v782
    %v785 = vlog2.pop %v784
    %v786 = vmul.f32 %v785, 0.6931472
    %v787 = vpack.c.bf16 %v786, %v786
    %788 = vmatprep.subr.bf16.mxu0 0
    %789 = vmatpush1.bf16.msra.mxu0 %v444
    %790 = vmatprep.subr.bf16.mxu0 0
    %791 = vmatpush1.bf16.msra.mxu0 %v445
    %792 = vmatprep.subr.bf16.mxu0 0
    %793 = vmatpush1.bf16.msra.mxu0 %v446
    %794 = vmatprep.subr.bf16.mxu0 0
    %795 = vmatpush1.bf16.msra.mxu0 %v447
    %796 = vmatprep.subr.bf16.mxu0 0
    %797 = vmatpush1.bf16.msra.mxu0 %v448
    %798 = vmatprep.subr.bf16.mxu0 0
    %799 = vmatpush1.bf16.msra.mxu0 %v449
    %800 = vmatprep.subr.bf16.mxu0 0
    %801 = vmatpush1.bf16.msra.mxu0 %v450
    %802 = vmatprep.subr.bf16.mxu0 0
    %803 = vmatpush1.bf16.msra.mxu0 %v451
    %804 = vmatprep.subr.bf16.mxu0 0
    %805 = vmatpush1.bf16.msra.mxu0 0
    %806 = vmatprep.subr.bf16.mxu0 0
    %807 = vmatpush1.bf16.msra.mxu0 0
    %808 = vmatprep.subr.bf16.mxu0 0
    %809 = vmatpush1.bf16.msra.mxu0 0
    %810 = vmatprep.subr.bf16.mxu0 0
    %811 = vmatpush1.bf16.msra.mxu0 0
    %812 = vmatprep.subr.bf16.mxu0 0
    %813 = vmatpush1.bf16.msra.mxu0 0
    %814 = vmatprep.subr.bf16.mxu0 0
    %815 = vmatpush1.bf16.msra.mxu0 0
    %816 = vmatprep.subr.bf16.mxu0 0
    %817 = vmatpush1.bf16.msra.mxu0 0
    %818 = vmatprep.subr.bf16.mxu0 0
    %819 = vmatpush1.bf16.msra.mxu0 0
    %820 = vmatprep.mubr.bf16.mxu0 0
    %821 = vmatmul.mubr.bf16.gmra.mrb[0].mxu0 %v787
    %v822 = vpop.f32.mrb[0].mxu0
    %v823 = vadd.f32 0.0, %v822
    %v824 = vpop.f32.mrb[0].mxu0
    %v825 = vpop.f32.mrb[0].mxu0
    %v826 = vpop.f32.mrb[0].mxu0
    %827 = vdwg.mxu0
    %v828 = vadd.f32 %v409, %v823
    %v829 = vadd.f32 %v411, %v823
    %v831 = vrot.slane %v829, 1
    %v833 = vmax.f32 %v828, %v831
    %v834 = vsub.f32 %v828, %v833
    %v835 = vmul.f32 %v834, 1.442695
    %v836 = vpow.pop %v835
    %v838 = vrot.slane %v833, 7
    %v840 = vsub.f32 %v829, %v838
    %v841 = vmul.f32 %v840, 1.442695
    %v842 = vpow.pop %v841
    %v844 = vrot.slane %v842, 1
    %v846 = vadd.f32 %v836, %v844
    %v847 = vrcp.pop %v846
    %v848 = vmul.f32 %v836, %v847
    %v850 = vrot.slane %v847, 7
    %v852 = vmul.f32 %v842, %v850
    %v853 = vsel %vm439, %v848, %v852
    %v854 = vsel %vm439, %v400, %v407
    %v855 = vsel %vm439, %v409, %v411
    %v856 = vmul.f32 %v853, %v855
    %vm857 = vcmask 1041408
    %v858 = vsel %vm857, %v856, 0.0
    %859 = vadd.xlane.f32.xlu0 %v858
    %v860 = vpop.xlane.xlu0 %859
    %v861 = vrot.slane %v860, 4
    %v862 = vadd.f32 %v860, %v861
    %v863 = vrot.slane %v862, 2
    %v864 = vadd.f32 %v862, %v863
    %v865 = vrot.slane %v864, 1
    %v866 = vadd.f32 %v864, %v865
    %s867 = vtos %v866
    %v868 = vstv %s867
    %v869 = vsub.f32 0.0, %v868
    %vm870 = vcmask 0
    %871 = vst.msk [vmem:[#allocation7] sm:$0x1] %vm870, %v869
    %872 = vst [vmem:[#allocation8] sm:$0x3] %v853
    %873 = vst [vmem:[#allocation10] sm:$0x3] %v854
    // Predicated region
    $region64: #{model_forward.1} parent=1 // pred_check
      _
    $region65: #{model_forward.1} parent=1 // pred_check_branch
      %875 = sbr.rel (0) target = $region67
    $region66: #{model_forward.1} parent=1 // pred_region
      %s877 = ssub.s32 16, 16
      %878 = vsyncadd [#allocation5], %s877
      %s880 = sshll.u32 [#allocation7], 4
      %s881 = int_to_ptr.vmem [resolvable:$true] %s880
      %883 = dma.vmem_to_hbm [thread:$0]  %s881, 16, %s7, [#allocation5]
    $region67: #{model_forward.1} parent=1 // pred_fallthru
      _
    // Predicated region
    $region68: #{model_forward.1} parent=1 // pred_check
      _
    $region69: #{model_forward.1} parent=1 // pred_check_branch
      %885 = sbr.rel (0) target = $region71
    $region70: #{model_forward.1} parent=1 // pred_region
      %s887 = ssub.s32 32, 32
      %888 = vsyncadd [#allocation9], %s887
      %s890 = sshll.u32 [#allocation8], 4
      %s891 = int_to_ptr.vmem [resolvable:$true] %s890
      %893 = dma.vmem_to_hbm [thread:$0]  %s891, 32, %s8, [#allocation9]
    $region71: #{model_forward.1} parent=1 // pred_fallthru
      _
    // Predicated region
    $region72: #{model_forward.1} parent=1 // pred_check
      _
    $region73: #{model_forward.1} parent=1 // pred_check_branch
      %895 = sbr.rel (0) target = $region75
    $region74: #{model_forward.1} parent=1 // pred_region
      %s897 = ssub.s32 32, 32
      %898 = vsyncadd [#allocation9], %s897
      %s900 = sshll.u32 [#allocation10], 4
      %s901 = int_to_ptr.vmem [resolvable:$true] %s900
      %903 = dma.vmem_to_hbm [thread:$0]  %s901, 32, %s9, [#allocation9]
    $region75: #{model_forward.1} parent=1 // pred_fallthru
      _
    // Predicated region
    $region76: #{model_forward.1} parent=1 // pred_check
      _
    $region77: #{model_forward.1} parent=1 // pred_check_branch
      %905 = sbr.rel (0) target = $region79
    $region78: #{model_forward.1} parent=1 // pred_region
      %906 = dma.done [#allocation5], 16
    $region79: #{model_forward.1} parent=1 // pred_fallthru
      _
    // Predicated region
    $region80: #{model_forward.1} parent=1 // pred_check
      _
    $region81: #{model_forward.1} parent=1 // pred_check_branch
      %908 = sbr.rel (0) target = $region83
    $region82: #{model_forward.1} parent=1 // pred_region
      %909 = dma.done [#allocation9], 32
    $region83: #{model_forward.1} parent=1 // pred_fallthru
      _
    // Predicated region
    $region84: #{model_forward.1} parent=1 // pred_check
      _
    $region85: #{model_forward.1} parent=1 // pred_check_branch
      %911 = sbr.rel (0) target = $region87
    $region86: #{model_forward.1} parent=1 // pred_region
      %912 = dma.done [#allocation9], 32
    $region87: #{model_forward.1} parent=1 // pred_fallthru
      _
    %913 = vsyncpa [#allocation5], 1
    %914 = vsyncpa [#allocation9], 1
    %915 = vsyncpa [#allocation6], 1
  %916 = vsyncmov [#allocation3]
  %s917 = vpop.sfrf %916
  %p918 = scmp.eq.s32.totalorder %s917, 0
  %p919 = pneg %p918
  %921 = shalt.err (%p919)

</llo_original>
